<compile_context>
chip_gen: v7x
topology: tpu7x:2x2x1
jax: 0.10.0
libtpu: 0.0.40
codegen_flags: <defaults>
</compile_context>

<pallas_src>
import functools

import jax
import jax.numpy as jnp
from jax import lax
from jax.experimental import pallas as pl
from jax.experimental.pallas import tpu as pltpu


_MAX_TR = 2048                          # cap on rows (of 128 pixels) per grid step
_VMEM_WORK_BUDGET = 20 * 1024 * 1024    # inputs (x2 buffers) + f32 temporaries
_VMEM_LIMIT = 32 * 1024 * 1024          # safe scoped limit on v5e/v6e/v7x


def _num_tensorcores():
    """Best-effort TensorCore count (2 on v7x); falls back to 1."""
    try:
        info = pltpu.get_tpu_info()
        for name in ("num_cores", "core_count", "num_tensorcores",
                     "tensorcore_count", "num_cores_per_chip"):
            v = getattr(info, name, None)
            if isinstance(v, int) and v >= 1:
                return v
    except Exception:
        pass
    return 1


def _recip(x):
    if hasattr(pl, "reciprocal"):
        return pl.reciprocal(x, approx=False)   # EUP slot, full precision
    return 1.0 / x


def _dc_ce_kernel(x_ref, t_ref, inter_ref, pred_ref, gt_ref, ce_ref, *,
                  num_classes, batch, tr, ar, tps, nsplit, l_total, ragged):
    """Partial reductions for softmax-dice + cross-entropy.

    x_ref : (B, C, TR, 128) logits tile       (pixels dense on sublanes+lanes)
    t_ref : (B, TR, 128)    int32 class-index tile
    inter_ref/pred_ref/gt_ref : (C*B, AR, 128) resident lane-wide accumulators
    ce_ref : (B, AR, 128)   resident per-pixel-CE accumulator
    """
    C = num_classes
    B = batch
    sp = pl.program_id(0)          # megacore split (parallel)
    t = pl.program_id(1)           # spatial row-tile (reduction, innermost)
    nfold = tr // ar

    @pl.when(t == 0)
    def _():
        inter_ref[...] = jnp.zeros_like(inter_ref)
        pred_ref[...] = jnp.zeros_like(pred_ref)
        gt_ref[...] = jnp.zeros_like(gt_ref)
        ce_ref[...] = jnp.zeros_like(ce_ref)

    def fold(v):
        # (B, TR, 128) -> (B, AR, 128): vreg-aligned sublane-group adds (VALU only)
        acc = v[:, 0:ar, :]
        for j in range(1, nfold):
            acc = acc + v[:, j * ar:(j + 1) * ar, :]
        return acc

    def body(masked):
        x = x_ref[...].astype(jnp.float32)        # (B, C, TR, 128)
        tgt = t_ref[...]                          # (B, TR, 128) int32

        if masked:
            row = lax.broadcasted_iota(jnp.int32, (1, tr, 128), 1)
            lane = lax.broadcasted_iota(jnp.int32, (1, tr, 128), 2)
            base_row = (sp * tps + t) * tr
            pix = (base_row + row) * 128 + lane
            valid = pix < l_total                 # (1, TR, 128) bool
            # Neutralize block-padding garbage BEFORE exp (no Inf/NaN possible).
            x = jnp.where(valid[:, None], x, 0.0)
        else:
            valid = None

        # Per-pixel channel max / sum: channels are an outer dim, so these are
        # plain elementwise VALU ops over dense (B, TR, 128) slabs.
        m = x[:, 0]
        for ci in range(1, C):
            m = jnp.maximum(m, x[:, ci])
        es = []
        s = None
        for ci in range(C):
            e_c = jnp.exp(x[:, ci] - m)
            es.append(e_c)
            s = e_c if s is None else s + e_c
        inv_s = _recip(s)                          # (B, TR, 128)
        log_s = jnp.log(s)
        if masked:
            log_s = jnp.where(valid, log_s, 0.0)

        # per-pixel CE = log(sum exp) - (x_target - m); accumulated lane-wide
        ce_loc = log_s
        for ci in range(C):
            p_c = es[ci] * inv_s
            eq_c = tgt == ci
            if masked:
                eq_c = jnp.logical_and(eq_c, valid)
                p_sum = jnp.where(valid, p_c, 0.0)
            else:
                p_sum = p_c
            xm_c = x[:, ci] - m
            lo, hi = ci * B, (ci + 1) * B
            inter_ref[lo:hi] += fold(jnp.where(eq_c, p_c, 0.0))
            pred_ref[lo:hi] += fold(p_sum)
            gt_ref[lo:hi] += fold(jnp.where(eq_c, 1.0, 0.0))
            ce_loc = ce_loc - jnp.where(eq_c, xm_c, 0.0)
        ce_ref[...] += fold(ce_loc)

    if ragged:
        last = nsplit * tps - 1
        gidx = sp * tps + t

        @pl.when(gidx == last)
        def _():
            body(True)

        @pl.when(gidx < last)
        def _():
            body(False)
    else:
        body(False)


@functools.partial(
    jax.jit,
    static_argnames=("weight_ce", "weight_dice", "weight_sc", "smooth",
                     "do_bg", "batch_dice"))
def dc_and_ce_sc_loss(net_output, target, *, weight_ce=1.0, weight_dice=1.0,
                      weight_sc=1.0, smooth=1.0, do_bg=True, batch_dice=False):
    """Forward pass of DC_and_CE_SCloss (ignore_label=None; sc term omitted)."""
    B, C, H, W = net_output.shape
    assert target.shape == (B, 1, H, W), "target must be (b, 1, x, y) class indices"
    L = H * W

    x2 = net_output.reshape(B, C, L)
    t2 = target[:, 0].reshape(B, L).astype(jnp.int32)

    # ----- lane-dense view: pixels fill both sublanes (rows of 128) and lanes
    NR = pl.cdiv(L, 128)
    if NR * 128 != L:
        # Rare case (spatial size not a multiple of 128): one small host pad.
        pad = NR * 128 - L
        x2 = jnp.pad(x2, ((0, 0), (0, 0), (0, pad)))
        t2 = jnp.pad(t2, ((0, 0), (0, pad)))
    x4 = x2.reshape(B, C, NR, 128)
    t4 = t2.reshape(B, NR, 128)

    # ----- row-tile size from a VMEM budget that includes f32 temporaries
    xb = net_output.dtype.itemsize
    per_row = (2 * (B * C * 128 * xb + B * 128 * 4)        # double-buffered inputs
               + 4 * B * C * 128 * 4 + 6 * B * 128 * 4)    # in-kernel f32 temps
    tr_cap = max(8, min(_MAX_TR, (_VMEM_WORK_BUDGET // per_row) // 8 * 8))
    TR = NR if NR <= tr_cap else tr_cap
    NT = pl.cdiv(NR, TR)

    # Megacore split only when >=2 TensorCores (v7x) and it divides evenly.
    nsplit = 2 if (_num_tensorcores() >= 2 and NT % 2 == 0) else 1
    tps = NT // nsplit
    AR = 8 if TR % 8 == 0 else TR
    ragged = (nsplit * tps * TR * 128) != L

    kernel = functools.partial(
        _dc_ce_kernel, num_classes=C, batch=B, tr=TR, ar=AR, tps=tps,
        nsplit=nsplit, l_total=L, ragged=ragged)

    grid_spec = pltpu.PrefetchScalarGridSpec(
        num_scalar_prefetch=0,
        grid=(nsplit, tps),
        in_specs=[
            pl.BlockSpec((B, C, TR, 128), lambda c, t: (0, 0, c * tps + t, 0)),
            pl.BlockSpec((B, TR, 128), lambda c, t: (0, c * tps + t, 0)),
        ],
        out_specs=[
            pl.BlockSpec((None, C * B, AR, 128), lambda c, t: (c, 0, 0, 0)),
            pl.BlockSpec((None, C * B, AR, 128), lambda c, t: (c, 0, 0, 0)),
            pl.BlockSpec((None, C * B, AR, 128), lambda c, t: (c, 0, 0, 0)),
            pl.BlockSpec((None, B, AR, 128), lambda c, t: (c, 0, 0, 0)),
        ],
    )

    elems = B * C * NT * TR * 128
    pix = B * NT * TR * 128
    cost = pl.CostEstimate(
        flops=int(14 * elems),
        transcendentals=int(elems + 2 * pix),              # exp/elem, log+recip/pixel
        bytes_accessed=int(elems * xb + pix * 4
                           + nsplit * (3 * C * B + B) * AR * 128 * 4),
    )

    inter_o, pred_o, gt_o, ce_o = pl.pallas_call(
        kernel,
        out_shape=(
            jax.ShapeDtypeStruct((nsplit, C * B, AR, 128), jnp.float32),
            jax.ShapeDtypeStruct((nsplit, C * B, AR, 128), jnp.float32),
            jax.ShapeDtypeStruct((nsplit, C * B, AR, 128), jnp.float32),
            jax.ShapeDtypeStruct((nsplit, B, AR, 128), jnp.float32),
        ),
        grid_spec=grid_spec,
        compiler_params=pltpu.CompilerParams(
            dimension_semantics=("parallel", "arbitrary"),
            vmem_limit_bytes=_VMEM_LIMIT,
        ),
        cost_estimate=cost,
    )(x4, t4)

    # ----- tiny finalization in plain JAX -----
    inter = inter_o.sum(axis=(0, 2, 3)).reshape(C, B).T      # (B, C)
    sum_pred = pred_o.sum(axis=(0, 2, 3)).reshape(C, B).T
    sum_gt = gt_o.sum(axis=(0, 2, 3)).reshape(C, B).T
    ce_total = ce_o.sum()

    if batch_dice:
        inter = inter.sum(axis=0)
        sum_pred = sum_pred.sum(axis=0)
        sum_gt = sum_gt.sum(axis=0)
    dc = (2.0 * inter + smooth) / jnp.maximum(sum_pred + sum_gt + smooth, 1e-8)
    if not do_bg:
        dc = dc[1:] if batch_dice else dc[:, 1:]
    dc_loss = -jnp.mean(dc)
    ce_loss = ce_total / jnp.float32(B * L)

    # TODO(synk): + weight_sc * sc_loss (MultiClassOneVsRestSCLoss undefined in spec)
    return weight_ce * ce_loss + weight_dice * dc_loss


def _reference_loss(net_output, target, weight_ce=1.0, weight_dice=1.0,
                    smooth=1.0, do_bg=True, batch_dice=False):
    x = net_output.astype(jnp.float32)
    tgt = target[:, 0].astype(jnp.int32)
    C = x.shape[1]
    p = jax.nn.softmax(x, axis=1)
    y_oh = jax.nn.one_hot(tgt, C, axis=1, dtype=jnp.float32)
    axes = (0, 2, 3) if batch_dice else (2, 3)
    tp = jnp.sum(p * y_oh, axis=axes)
    sp = jnp.sum(p, axis=axes)
    sg = jnp.sum(y_oh, axis=axes)
    dc = (2.0 * tp + smooth) / jnp.maximum(sp + sg + smooth, 1e-8)
    if not do_bg:
        dc = dc[1:] if batch_dice else dc[:, 1:]
    dc_loss = -jnp.mean(dc)
    logp = jax.nn.log_softmax(x, axis=1)
    ce = -jnp.take_along_axis(logp, tgt[:, None], axis=1)[:, 0]
    ce_loss = jnp.mean(ce)
    return weight_ce * ce_loss + weight_dice * dc_loss


if __name__ == "__main__":
    key = jax.random.PRNGKey(0)
    k1, k2 = jax.random.split(key)

    B, C, H, W = 2, 4, 16, 16
    # logits (no nonlinearity applied by the network)
    net_output = jax.random.normal(k1, (B, C, H, W), dtype=jnp.float32)
    # class-index targets, shape (b, 1, x, y) as the module requires
    target = jax.random.randint(k2, (B, 1, H, W), 0, C, dtype=jnp.int32)

    loss = dc_and_ce_sc_loss(net_output, target)
    loss = jax.block_until_ready(loss)

    ref = _reference_loss(net_output, target)
    assert jnp.allclose(loss, ref, rtol=1e-5, atol=1e-5), (loss, ref)

    print("KERNEL_OK")
</pallas_src>

<mosaic_0001>
module attributes {stable_mosaic.version = 11 : i64} {
  func.func @_dc_ce_kernel(%arg0: i32, %arg1: i32, %arg2: memref<2x4x2x128xf32, #tpu.memory_space<vmem>>, %arg3: memref<2x2x128xi32, #tpu.memory_space<vmem>>, %arg4: memref<1x8x2x128xf32, #tpu.memory_space<vmem>>, %arg5: memref<1x8x2x128xf32, #tpu.memory_space<vmem>>, %arg6: memref<1x8x2x128xf32, #tpu.memory_space<vmem>>, %arg7: memref<1x2x2x128xf32, #tpu.memory_space<vmem>>) attributes {dimension_semantics = [#tpu.dimension_semantics<parallel>, #tpu.dimension_semantics<arbitrary>], iteration_bounds = array<i64: 1, 1>, scalar_prefetch = 0 : i64, scratch_operands = 0 : i64, tpu.core_type = #tpu.core_type<tc>, window_params = [{transform_indices = @transform_0, window_bounds = array<i64: 2, 4, 2, 128>}, {transform_indices = @transform_1, window_bounds = array<i64: 2, 2, 128>}, {transform_indices = @transform_2, window_bounds = array<i64: 1, 8, 2, 128>}, {transform_indices = @transform_3, window_bounds = array<i64: 1, 8, 2, 128>}, {transform_indices = @transform_4, window_bounds = array<i64: 1, 8, 2, 128>}, {transform_indices = @transform_5, window_bounds = array<i64: 1, 2, 2, 128>}]} {
    %c0_i32 = arith.constant 0 : i32
    %0 = arith.cmpi eq, %arg1, %c0_i32 : i32
    %1 = arith.extui %0 : i1 to i32
    %c0_i32_0 = arith.constant 0 : i32
    %2 = arith.cmpi ne, %1, %c0_i32_0 : i32
    scf.if %2 {
      %cst_124 = arith.constant 0.000000e+00 : f32
      %171 = vector.broadcast %cst_124 : f32 to vector<8x2x128xf32>
      %c0_125 = arith.constant 0 : index
      %c0_126 = arith.constant 0 : index
      %c0_127 = arith.constant 0 : index
      %c0_128 = arith.constant 0 : index
      %172 = vector.load %arg4[%c0_125, %c0_126, %c0_127, %c0_128] : memref<1x8x2x128xf32, #tpu.memory_space<vmem>>, vector<1x8x2x128xf32>
      %173 = vector.shape_cast %172 : vector<1x8x2x128xf32> to vector<8x2x128xf32>
      %174 = vector.shape_cast %171 : vector<8x2x128xf32> to vector<1x8x2x128xf32>
      tpu.vector_store %arg4[%c0_125, %c0_126, %c0_127, %c0_128], %174 {strides = array<i32>} : memref<1x8x2x128xf32, #tpu.memory_space<vmem>>, vector<1x8x2x128xf32>,
      %cst_129 = arith.constant 0.000000e+00 : f32
      %175 = vector.broadcast %cst_129 : f32 to vector<8x2x128xf32>
      %c0_130 = arith.constant 0 : index
      %c0_131 = arith.constant 0 : index
      %c0_132 = arith.constant 0 : index
      %c0_133 = arith.constant 0 : index
      %176 = vector.load %arg5[%c0_130, %c0_131, %c0_132, %c0_133] : memref<1x8x2x128xf32, #tpu.memory_space<vmem>>, vector<1x8x2x128xf32>
      %177 = vector.shape_cast %176 : vector<1x8x2x128xf32> to vector<8x2x128xf32>
      %178 = vector.shape_cast %175 : vector<8x2x128xf32> to vector<1x8x2x128xf32>
      tpu.vector_store %arg5[%c0_130, %c0_131, %c0_132, %c0_133], %178 {strides = array<i32>} : memref<1x8x2x128xf32, #tpu.memory_space<vmem>>, vector<1x8x2x128xf32>,
      %cst_134 = arith.constant 0.000000e+00 : f32
      %179 = vector.broadcast %cst_134 : f32 to vector<8x2x128xf32>
      %c0_135 = arith.constant 0 : index
      %c0_136 = arith.constant 0 : index
      %c0_137 = arith.constant 0 : index
      %c0_138 = arith.constant 0 : index
      %180 = vector.load %arg6[%c0_135, %c0_136, %c0_137, %c0_138] : memref<1x8x2x128xf32, #tpu.memory_space<vmem>>, vector<1x8x2x128xf32>
      %181 = vector.shape_cast %180 : vector<1x8x2x128xf32> to vector<8x2x128xf32>
      %182 = vector.shape_cast %179 : vector<8x2x128xf32> to vector<1x8x2x128xf32>
      tpu.vector_store %arg6[%c0_135, %c0_136, %c0_137, %c0_138], %182 {strides = array<i32>} : memref<1x8x2x128xf32, #tpu.memory_space<vmem>>, vector<1x8x2x128xf32>,
      %cst_139 = arith.constant 0.000000e+00 : f32
      %183 = vector.broadcast %cst_139 : f32 to vector<2x2x128xf32>
      %c0_140 = arith.constant 0 : index
      %c0_141 = arith.constant 0 : index
      %c0_142 = arith.constant 0 : index
      %c0_143 = arith.constant 0 : index
      %184 = vector.load %arg7[%c0_140, %c0_141, %c0_142, %c0_143] : memref<1x2x2x128xf32, #tpu.memory_space<vmem>>, vector<1x2x2x128xf32>
      %185 = vector.shape_cast %184 : vector<1x2x2x128xf32> to vector<2x2x128xf32>
      %186 = vector.shape_cast %183 : vector<2x2x128xf32> to vector<1x2x2x128xf32>
      tpu.vector_store %arg7[%c0_140, %c0_141, %c0_142, %c0_143], %186 {strides = array<i32>} : memref<1x2x2x128xf32, #tpu.memory_space<vmem>>, vector<1x2x2x128xf32>,
    } else {
    }
    %c0 = arith.constant 0 : index
    %c0_1 = arith.constant 0 : index
    %c0_2 = arith.constant 0 : index
    %c0_3 = arith.constant 0 : index
    %3 = vector.load %arg2[%c0, %c0_1, %c0_2, %c0_3] : memref<2x4x2x128xf32, #tpu.memory_space<vmem>>, vector<2x4x2x128xf32>
    %c0_4 = arith.constant 0 : index
    %c0_5 = arith.constant 0 : index
    %c0_6 = arith.constant 0 : index
    %4 = vector.load %arg3[%c0_4, %c0_5, %c0_6] : memref<2x2x128xi32, #tpu.memory_space<vmem>>, vector<2x2x128xi32>
    %5 = vector.extract_strided_slice %3 {offsets = [0, 0, 0, 0], sizes = [2, 1, 2, 128], strides = [1, 1, 1, 1]} : vector<2x4x2x128xf32> to vector<2x1x2x128xf32>
    %6 = vector.shape_cast %5 : vector<2x1x2x128xf32> to vector<2x2x128xf32>
    %7 = vector.extract_strided_slice %3 {offsets = [0, 1, 0, 0], sizes = [2, 1, 2, 128], strides = [1, 1, 1, 1]} : vector<2x4x2x128xf32> to vector<2x1x2x128xf32>
    %8 = vector.shape_cast %7 : vector<2x1x2x128xf32> to vector<2x2x128xf32>
    %9 = arith.maximumf %6, %8 : vector<2x2x128xf32>
    %10 = vector.extract_strided_slice %3 {offsets = [0, 2, 0, 0], sizes = [2, 1, 2, 128], strides = [1, 1, 1, 1]} : vector<2x4x2x128xf32> to vector<2x1x2x128xf32>
    %11 = vector.shape_cast %10 : vector<2x1x2x128xf32> to vector<2x2x128xf32>
    %12 = arith.maximumf %9, %11 : vector<2x2x128xf32>
    %13 = vector.extract_strided_slice %3 {offsets = [0, 3, 0, 0], sizes = [2, 1, 2, 128], strides = [1, 1, 1, 1]} : vector<2x4x2x128xf32> to vector<2x1x2x128xf32>
    %14 = vector.shape_cast %13 : vector<2x1x2x128xf32> to vector<2x2x128xf32>
    %15 = arith.maximumf %12, %14 : vector<2x2x128xf32>
    %16 = vector.extract_strided_slice %3 {offsets = [0, 0, 0, 0], sizes = [2, 1, 2, 128], strides = [1, 1, 1, 1]} : vector<2x4x2x128xf32> to vector<2x1x2x128xf32>
    %17 = vector.shape_cast %16 : vector<2x1x2x128xf32> to vector<2x2x128xf32>
    %18 = arith.subf %17, %15 : vector<2x2x128xf32>
    %19 = math.exp %18 : vector<2x2x128xf32>
    %20 = vector.extract_strided_slice %3 {offsets = [0, 1, 0, 0], sizes = [2, 1, 2, 128], strides = [1, 1, 1, 1]} : vector<2x4x2x128xf32> to vector<2x1x2x128xf32>
    %21 = vector.shape_cast %20 : vector<2x1x2x128xf32> to vector<2x2x128xf32>
    %22 = arith.subf %21, %15 : vector<2x2x128xf32>
    %23 = math.exp %22 : vector<2x2x128xf32>
    %24 = arith.addf %19, %23 : vector<2x2x128xf32>
    %25 = vector.extract_strided_slice %3 {offsets = [0, 2, 0, 0], sizes = [2, 1, 2, 128], strides = [1, 1, 1, 1]} : vector<2x4x2x128xf32> to vector<2x1x2x128xf32>
    %26 = vector.shape_cast %25 : vector<2x1x2x128xf32> to vector<2x2x128xf32>
    %27 = arith.subf %26, %15 : vector<2x2x128xf32>
    %28 = math.exp %27 : vector<2x2x128xf32>
    %29 = arith.addf %24, %28 : vector<2x2x128xf32>
    %30 = vector.extract_strided_slice %3 {offsets = [0, 3, 0, 0], sizes = [2, 1, 2, 128], strides = [1, 1, 1, 1]} : vector<2x4x2x128xf32> to vector<2x1x2x128xf32>
    %31 = vector.shape_cast %30 : vector<2x1x2x128xf32> to vector<2x2x128xf32>
    %32 = arith.subf %31, %15 : vector<2x2x128xf32>
    %33 = math.exp %32 : vector<2x2x128xf32>
    %34 = arith.addf %29, %33 : vector<2x2x128xf32>
    %35 = tpu.reciprocal %34 : vector<2x2x128xf32> -> vector<2x2x128xf32>
    %36 = math.log %34 : vector<2x2x128xf32>
    %37 = arith.mulf %19, %35 : vector<2x2x128xf32>
    %c0_i32_7 = arith.constant 0 : i32
    %38 = vector.broadcast %c0_i32_7 : i32 to vector<2x2x128xi32>
    %39 = arith.cmpi eq, %4, %38 : vector<2x2x128xi32>
    %40 = vector.extract_strided_slice %3 {offsets = [0, 0, 0, 0], sizes = [2, 1, 2, 128], strides = [1, 1, 1, 1]} : vector<2x4x2x128xf32> to vector<2x1x2x128xf32>
    %41 = vector.shape_cast %40 : vector<2x1x2x128xf32> to vector<2x2x128xf32>
    %42 = arith.subf %41, %15 : vector<2x2x128xf32>
    %c0_8 = arith.constant 0 : index
    %c0_9 = arith.constant 0 : index
    %c0_10 = arith.constant 0 : index
    %c0_11 = arith.constant 0 : index
    %43 = vector.load %arg4[%c0_8, %c0_9, %c0_10, %c0_11] : memref<1x8x2x128xf32, #tpu.memory_space<vmem>>, vector<1x2x2x128xf32>
    %44 = vector.shape_cast %43 : vector<1x2x2x128xf32> to vector<2x2x128xf32>
    %cst = arith.constant 0.000000e+00 : f32
    %45 = vector.broadcast %cst : f32 to vector<2x2x128xf32>
    %46 = arith.select %39, %37, %45 : vector<2x2x128xi1>, vector<2x2x128xf32>
    %47 = arith.addf %44, %46 : vector<2x2x128xf32>
    %c0_12 = arith.constant 0 : index
    %c0_13 = arith.constant 0 : index
    %c0_14 = arith.constant 0 : index
    %c0_15 = arith.constant 0 : index
    %48 = vector.load %arg4[%c0_12, %c0_13, %c0_14, %c0_15] : memref<1x8x2x128xf32, #tpu.memory_space<vmem>>, vector<1x2x2x128xf32>
    %49 = vector.shape_cast %48 : vector<1x2x2x128xf32> to vector<2x2x128xf32>
    %50 = vector.shape_cast %47 : vector<2x2x128xf32> to vector<1x2x2x128xf32>
    tpu.vector_store %arg4[%c0_12, %c0_13, %c0_14, %c0_15], %50 {strides = array<i32>} : memref<1x8x2x128xf32, #tpu.memory_space<vmem>>, vector<1x2x2x128xf32>,
    %c0_16 = arith.constant 0 : index
    %c0_17 = arith.constant 0 : index
    %c0_18 = arith.constant 0 : index
    %c0_19 = arith.constant 0 : index
    %51 = vector.load %arg5[%c0_16, %c0_17, %c0_18, %c0_19] : memref<1x8x2x128xf32, #tpu.memory_space<vmem>>, vector<1x2x2x128xf32>
    %52 = vector.shape_cast %51 : vector<1x2x2x128xf32> to vector<2x2x128xf32>
    %53 = arith.addf %52, %37 : vector<2x2x128xf32>
    %c0_20 = arith.constant 0 : index
    %c0_21 = arith.constant 0 : index
    %c0_22 = arith.constant 0 : index
    %c0_23 = arith.constant 0 : index
    %54 = vector.load %arg5[%c0_20, %c0_21, %c0_22, %c0_23] : memref<1x8x2x128xf32, #tpu.memory_space<vmem>>, vector<1x2x2x128xf32>
    %55 = vector.shape_cast %54 : vector<1x2x2x128xf32> to vector<2x2x128xf32>
    %56 = vector.shape_cast %53 : vector<2x2x128xf32> to vector<1x2x2x128xf32>
    tpu.vector_store %arg5[%c0_20, %c0_21, %c0_22, %c0_23], %56 {strides = array<i32>} : memref<1x8x2x128xf32, #tpu.memory_space<vmem>>, vector<1x2x2x128xf32>,
    %c0_24 = arith.constant 0 : index
    %c0_25 = arith.constant 0 : index
    %c0_26 = arith.constant 0 : index
    %c0_27 = arith.constant 0 : index
    %57 = vector.load %arg6[%c0_24, %c0_25, %c0_26, %c0_27] : memref<1x8x2x128xf32, #tpu.memory_space<vmem>>, vector<1x2x2x128xf32>
    %58 = vector.shape_cast %57 : vector<1x2x2x128xf32> to vector<2x2x128xf32>
    %cst_28 = arith.constant 1.000000e+00 : f32
    %cst_29 = arith.constant 0.000000e+00 : f32
    %59 = vector.broadcast %cst_28 : f32 to vector<2x2x128xf32>
    %60 = vector.broadcast %cst_29 : f32 to vector<2x2x128xf32>
    %61 = arith.select %39, %59, %60 : vector<2x2x128xi1>, vector<2x2x128xf32>
    %62 = arith.addf %58, %61 : vector<2x2x128xf32>
    %c0_30 = arith.constant 0 : index
    %c0_31 = arith.constant 0 : index
    %c0_32 = arith.constant 0 : index
    %c0_33 = arith.constant 0 : index
    %63 = vector.load %arg6[%c0_30, %c0_31, %c0_32, %c0_33] : memref<1x8x2x128xf32, #tpu.memory_space<vmem>>, vector<1x2x2x128xf32>
    %64 = vector.shape_cast %63 : vector<1x2x2x128xf32> to vector<2x2x128xf32>
    %65 = vector.shape_cast %62 : vector<2x2x128xf32> to vector<1x2x2x128xf32>
    tpu.vector_store %arg6[%c0_30, %c0_31, %c0_32, %c0_33], %65 {strides = array<i32>} : memref<1x8x2x128xf32, #tpu.memory_space<vmem>>, vector<1x2x2x128xf32>,
    %cst_34 = arith.constant 0.000000e+00 : f32
    %66 = vector.broadcast %cst_34 : f32 to vector<2x2x128xf32>
    %67 = arith.select %39, %42, %66 : vector<2x2x128xi1>, vector<2x2x128xf32>
    %68 = arith.subf %36, %67 : vector<2x2x128xf32>
    %69 = arith.mulf %23, %35 : vector<2x2x128xf32>
    %c1_i32 = arith.constant 1 : i32
    %70 = vector.broadcast %c1_i32 : i32 to vector<2x2x128xi32>
    %71 = arith.cmpi eq, %4, %70 : vector<2x2x128xi32>
    %72 = vector.extract_strided_slice %3 {offsets = [0, 1, 0, 0], sizes = [2, 1, 2, 128], strides = [1, 1, 1, 1]} : vector<2x4x2x128xf32> to vector<2x1x2x128xf32>
    %73 = vector.shape_cast %72 : vector<2x1x2x128xf32> to vector<2x2x128xf32>
    %74 = arith.subf %73, %15 : vector<2x2x128xf32>
    %c0_35 = arith.constant 0 : index
    %c2 = arith.constant 2 : index
    %c0_36 = arith.constant 0 : index
    %c0_37 = arith.constant 0 : index
    %75 = vector.load %arg4[%c0_35, %c2, %c0_36, %c0_37] : memref<1x8x2x128xf32, #tpu.memory_space<vmem>>, vector<1x2x2x128xf32>
    %76 = vector.shape_cast %75 : vector<1x2x2x128xf32> to vector<2x2x128xf32>
    %cst_38 = arith.constant 0.000000e+00 : f32
    %77 = vector.broadcast %cst_38 : f32 to vector<2x2x128xf32>
    %78 = arith.select %71, %69, %77 : vector<2x2x128xi1>, vector<2x2x128xf32>
    %79 = arith.addf %76, %78 : vector<2x2x128xf32>
    %c0_39 = arith.constant 0 : index
    %c2_40 = arith.constant 2 : index
    %c0_41 = arith.constant 0 : index
    %c0_42 = arith.constant 0 : index
    %80 = vector.load %arg4[%c0_39, %c2_40, %c0_41, %c0_42] : memref<1x8x2x128xf32, #tpu.memory_space<vmem>>, vector<1x2x2x128xf32>
    %81 = vector.shape_cast %80 : vector<1x2x2x128xf32> to vector<2x2x128xf32>
    %82 = vector.shape_cast %79 : vector<2x2x128xf32> to vector<1x2x2x128xf32>
    tpu.vector_store %arg4[%c0_39, %c2_40, %c0_41, %c0_42], %82 {strides = array<i32>} : memref<1x8x2x128xf32, #tpu.memory_space<vmem>>, vector<1x2x2x128xf32>,
    %c0_43 = arith.constant 0 : index
    %c2_44 = arith.constant 2 : index
    %c0_45 = arith.constant 0 : index
    %c0_46 = arith.constant 0 : index
    %83 = vector.load %arg5[%c0_43, %c2_44, %c0_45, %c0_46] : memref<1x8x2x128xf32, #tpu.memory_space<vmem>>, vector<1x2x2x128xf32>
    %84 = vector.shape_cast %83 : vector<1x2x2x128xf32> to vector<2x2x128xf32>
    %85 = arith.addf %84, %69 : vector<2x2x128xf32>
    %c0_47 = arith.constant 0 : index
    %c2_48 = arith.constant 2 : index
    %c0_49 = arith.constant 0 : index
    %c0_50 = arith.constant 0 : index
    %86 = vector.load %arg5[%c0_47, %c2_48, %c0_49, %c0_50] : memref<1x8x2x128xf32, #tpu.memory_space<vmem>>, vector<1x2x2x128xf32>
    %87 = vector.shape_cast %86 : vector<1x2x2x128xf32> to vector<2x2x128xf32>
    %88 = vector.shape_cast %85 : vector<2x2x128xf32> to vector<1x2x2x128xf32>
    tpu.vector_store %arg5[%c0_47, %c2_48, %c0_49, %c0_50], %88 {strides = array<i32>} : memref<1x8x2x128xf32, #tpu.memory_space<vmem>>, vector<1x2x2x128xf32>,
    %c0_51 = arith.constant 0 : index
    %c2_52 = arith.constant 2 : index
    %c0_53 = arith.constant 0 : index
    %c0_54 = arith.constant 0 : index
    %89 = vector.load %arg6[%c0_51, %c2_52, %c0_53, %c0_54] : memref<1x8x2x128xf32, #tpu.memory_space<vmem>>, vector<1x2x2x128xf32>
    %90 = vector.shape_cast %89 : vector<1x2x2x128xf32> to vector<2x2x128xf32>
    %cst_55 = arith.constant 1.000000e+00 : f32
    %cst_56 = arith.constant 0.000000e+00 : f32
    %91 = vector.broadcast %cst_55 : f32 to vector<2x2x128xf32>
    %92 = vector.broadcast %cst_56 : f32 to vector<2x2x128xf32>
    %93 = arith.select %71, %91, %92 : vector<2x2x128xi1>, vector<2x2x128xf32>
    %94 = arith.addf %90, %93 : vector<2x2x128xf32>
    %c0_57 = arith.constant 0 : index
    %c2_58 = arith.constant 2 : index
    %c0_59 = arith.constant 0 : index
    %c0_60 = arith.constant 0 : index
    %95 = vector.load %arg6[%c0_57, %c2_58, %c0_59, %c0_60] : memref<1x8x2x128xf32, #tpu.memory_space<vmem>>, vector<1x2x2x128xf32>
    %96 = vector.shape_cast %95 : vector<1x2x2x128xf32> to vector<2x2x128xf32>
    %97 = vector.shape_cast %94 : vector<2x2x128xf32> to vector<1x2x2x128xf32>
    tpu.vector_store %arg6[%c0_57, %c2_58, %c0_59, %c0_60], %97 {strides = array<i32>} : memref<1x8x2x128xf32, #tpu.memory_space<vmem>>, vector<1x2x2x128xf32>,
    %cst_61 = arith.constant 0.000000e+00 : f32
    %98 = vector.broadcast %cst_61 : f32 to vector<2x2x128xf32>
    %99 = arith.select %71, %74, %98 : vector<2x2x128xi1>, vector<2x2x128xf32>
    %100 = arith.subf %68, %99 : vector<2x2x128xf32>
    %101 = arith.mulf %28, %35 : vector<2x2x128xf32>
    %c2_i32 = arith.constant 2 : i32
    %102 = vector.broadcast %c2_i32 : i32 to vector<2x2x128xi32>
    %103 = arith.cmpi eq, %4, %102 : vector<2x2x128xi32>
    %104 = vector.extract_strided_slice %3 {offsets = [0, 2, 0, 0], sizes = [2, 1, 2, 128], strides = [1, 1, 1, 1]} : vector<2x4x2x128xf32> to vector<2x1x2x128xf32>
    %105 = vector.shape_cast %104 : vector<2x1x2x128xf32> to vector<2x2x128xf32>
    %106 = arith.subf %105, %15 : vector<2x2x128xf32>
    %c0_62 = arith.constant 0 : index
    %c4 = arith.constant 4 : index
    %c0_63 = arith.constant 0 : index
    %c0_64 = arith.constant 0 : index
    %107 = vector.load %arg4[%c0_62, %c4, %c0_63, %c0_64] : memref<1x8x2x128xf32, #tpu.memory_space<vmem>>, vector<1x2x2x128xf32>
    %108 = vector.shape_cast %107 : vector<1x2x2x128xf32> to vector<2x2x128xf32>
    %cst_65 = arith.constant 0.000000e+00 : f32
    %109 = vector.broadcast %cst_65 : f32 to vector<2x2x128xf32>
    %110 = arith.select %103, %101, %109 : vector<2x2x128xi1>, vector<2x2x128xf32>
    %111 = arith.addf %108, %110 : vector<2x2x128xf32>
    %c0_66 = arith.constant 0 : index
    %c4_67 = arith.constant 4 : index
    %c0_68 = arith.constant 0 : index
    %c0_69 = arith.constant 0 : index
    %112 = vector.load %arg4[%c0_66, %c4_67, %c0_68, %c0_69] : memref<1x8x2x128xf32, #tpu.memory_space<vmem>>, vector<1x2x2x128xf32>
    %113 = vector.shape_cast %112 : vector<1x2x2x128xf32> to vector<2x2x128xf32>
    %114 = vector.shape_cast %111 : vector<2x2x128xf32> to vector<1x2x2x128xf32>
    tpu.vector_store %arg4[%c0_66, %c4_67, %c0_68, %c0_69], %114 {strides = array<i32>} : memref<1x8x2x128xf32, #tpu.memory_space<vmem>>, vector<1x2x2x128xf32>,
    %c0_70 = arith.constant 0 : index
    %c4_71 = arith.constant 4 : index
    %c0_72 = arith.constant 0 : index
    %c0_73 = arith.constant 0 : index
    %115 = vector.load %arg5[%c0_70, %c4_71, %c0_72, %c0_73] : memref<1x8x2x128xf32, #tpu.memory_space<vmem>>, vector<1x2x2x128xf32>
    %116 = vector.shape_cast %115 : vector<1x2x2x128xf32> to vector<2x2x128xf32>
    %117 = arith.addf %116, %101 : vector<2x2x128xf32>
    %c0_74 = arith.constant 0 : index
    %c4_75 = arith.constant 4 : index
    %c0_76 = arith.constant 0 : index
    %c0_77 = arith.constant 0 : index
    %118 = vector.load %arg5[%c0_74, %c4_75, %c0_76, %c0_77] : memref<1x8x2x128xf32, #tpu.memory_space<vmem>>, vector<1x2x2x128xf32>
    %119 = vector.shape_cast %118 : vector<1x2x2x128xf32> to vector<2x2x128xf32>
    %120 = vector.shape_cast %117 : vector<2x2x128xf32> to vector<1x2x2x128xf32>
    tpu.vector_store %arg5[%c0_74, %c4_75, %c0_76, %c0_77], %120 {strides = array<i32>} : memref<1x8x2x128xf32, #tpu.memory_space<vmem>>, vector<1x2x2x128xf32>,
    %c0_78 = arith.constant 0 : index
    %c4_79 = arith.constant 4 : index
    %c0_80 = arith.constant 0 : index
    %c0_81 = arith.constant 0 : index
    %121 = vector.load %arg6[%c0_78, %c4_79, %c0_80, %c0_81] : memref<1x8x2x128xf32, #tpu.memory_space<vmem>>, vector<1x2x2x128xf32>
    %122 = vector.shape_cast %121 : vector<1x2x2x128xf32> to vector<2x2x128xf32>
    %cst_82 = arith.constant 1.000000e+00 : f32
    %cst_83 = arith.constant 0.000000e+00 : f32
    %123 = vector.broadcast %cst_82 : f32 to vector<2x2x128xf32>
    %124 = vector.broadcast %cst_83 : f32 to vector<2x2x128xf32>
    %125 = arith.select %103, %123, %124 : vector<2x2x128xi1>, vector<2x2x128xf32>
    %126 = arith.addf %122, %125 : vector<2x2x128xf32>
    %c0_84 = arith.constant 0 : index
    %c4_85 = arith.constant 4 : index
    %c0_86 = arith.constant 0 : index
    %c0_87 = arith.constant 0 : index
    %127 = vector.load %arg6[%c0_84, %c4_85, %c0_86, %c0_87] : memref<1x8x2x128xf32, #tpu.memory_space<vmem>>, vector<1x2x2x128xf32>
    %128 = vector.shape_cast %127 : vector<1x2x2x128xf32> to vector<2x2x128xf32>
    %129 = vector.shape_cast %126 : vector<2x2x128xf32> to vector<1x2x2x128xf32>
    tpu.vector_store %arg6[%c0_84, %c4_85, %c0_86, %c0_87], %129 {strides = array<i32>} : memref<1x8x2x128xf32, #tpu.memory_space<vmem>>, vector<1x2x2x128xf32>,
    %cst_88 = arith.constant 0.000000e+00 : f32
    %130 = vector.broadcast %cst_88 : f32 to vector<2x2x128xf32>
    %131 = arith.select %103, %106, %130 : vector<2x2x128xi1>, vector<2x2x128xf32>
    %132 = arith.subf %100, %131 : vector<2x2x128xf32>
    %133 = arith.mulf %33, %35 : vector<2x2x128xf32>
    %c3_i32 = arith.constant 3 : i32
    %134 = vector.broadcast %c3_i32 : i32 to vector<2x2x128xi32>
    %135 = arith.cmpi eq, %4, %134 : vector<2x2x128xi32>
    %136 = vector.extract_strided_slice %3 {offsets = [0, 3, 0, 0], sizes = [2, 1, 2, 128], strides = [1, 1, 1, 1]} : vector<2x4x2x128xf32> to vector<2x1x2x128xf32>
    %137 = vector.shape_cast %136 : vector<2x1x2x128xf32> to vector<2x2x128xf32>
    %138 = arith.subf %137, %15 : vector<2x2x128xf32>
    %c0_89 = arith.constant 0 : index
    %c6 = arith.constant 6 : index
    %c0_90 = arith.constant 0 : index
    %c0_91 = arith.constant 0 : index
    %139 = vector.load %arg4[%c0_89, %c6, %c0_90, %c0_91] : memref<1x8x2x128xf32, #tpu.memory_space<vmem>>, vector<1x2x2x128xf32>
    %140 = vector.shape_cast %139 : vector<1x2x2x128xf32> to vector<2x2x128xf32>
    %cst_92 = arith.constant 0.000000e+00 : f32
    %141 = vector.broadcast %cst_92 : f32 to vector<2x2x128xf32>
    %142 = arith.select %135, %133, %141 : vector<2x2x128xi1>, vector<2x2x128xf32>
    %143 = arith.addf %140, %142 : vector<2x2x128xf32>
    %c0_93 = arith.constant 0 : index
    %c6_94 = arith.constant 6 : index
    %c0_95 = arith.constant 0 : index
    %c0_96 = arith.constant 0 : index
    %144 = vector.load %arg4[%c0_93, %c6_94, %c0_95, %c0_96] : memref<1x8x2x128xf32, #tpu.memory_space<vmem>>, vector<1x2x2x128xf32>
    %145 = vector.shape_cast %144 : vector<1x2x2x128xf32> to vector<2x2x128xf32>
    %146 = vector.shape_cast %143 : vector<2x2x128xf32> to vector<1x2x2x128xf32>
    tpu.vector_store %arg4[%c0_93, %c6_94, %c0_95, %c0_96], %146 {strides = array<i32>} : memref<1x8x2x128xf32, #tpu.memory_space<vmem>>, vector<1x2x2x128xf32>,
    %c0_97 = arith.constant 0 : index
    %c6_98 = arith.constant 6 : index
    %c0_99 = arith.constant 0 : index
    %c0_100 = arith.constant 0 : index
    %147 = vector.load %arg5[%c0_97, %c6_98, %c0_99, %c0_100] : memref<1x8x2x128xf32, #tpu.memory_space<vmem>>, vector<1x2x2x128xf32>
    %148 = vector.shape_cast %147 : vector<1x2x2x128xf32> to vector<2x2x128xf32>
    %149 = arith.addf %148, %133 : vector<2x2x128xf32>
    %c0_101 = arith.constant 0 : index
    %c6_102 = arith.constant 6 : index
    %c0_103 = arith.constant 0 : index
    %c0_104 = arith.constant 0 : index
    %150 = vector.load %arg5[%c0_101, %c6_102, %c0_103, %c0_104] : memref<1x8x2x128xf32, #tpu.memory_space<vmem>>, vector<1x2x2x128xf32>
    %151 = vector.shape_cast %150 : vector<1x2x2x128xf32> to vector<2x2x128xf32>
    %152 = vector.shape_cast %149 : vector<2x2x128xf32> to vector<1x2x2x128xf32>
    tpu.vector_store %arg5[%c0_101, %c6_102, %c0_103, %c0_104], %152 {strides = array<i32>} : memref<1x8x2x128xf32, #tpu.memory_space<vmem>>, vector<1x2x2x128xf32>,
    %c0_105 = arith.constant 0 : index
    %c6_106 = arith.constant 6 : index
    %c0_107 = arith.constant 0 : index
    %c0_108 = arith.constant 0 : index
    %153 = vector.load %arg6[%c0_105, %c6_106, %c0_107, %c0_108] : memref<1x8x2x128xf32, #tpu.memory_space<vmem>>, vector<1x2x2x128xf32>
    %154 = vector.shape_cast %153 : vector<1x2x2x128xf32> to vector<2x2x128xf32>
    %cst_109 = arith.constant 1.000000e+00 : f32
    %cst_110 = arith.constant 0.000000e+00 : f32
    %155 = vector.broadcast %cst_109 : f32 to vector<2x2x128xf32>
    %156 = vector.broadcast %cst_110 : f32 to vector<2x2x128xf32>
    %157 = arith.select %135, %155, %156 : vector<2x2x128xi1>, vector<2x2x128xf32>
    %158 = arith.addf %154, %157 : vector<2x2x128xf32>
    %c0_111 = arith.constant 0 : index
    %c6_112 = arith.constant 6 : index
    %c0_113 = arith.constant 0 : index
    %c0_114 = arith.constant 0 : index
    %159 = vector.load %arg6[%c0_111, %c6_112, %c0_113, %c0_114] : memref<1x8x2x128xf32, #tpu.memory_space<vmem>>, vector<1x2x2x128xf32>
    %160 = vector.shape_cast %159 : vector<1x2x2x128xf32> to vector<2x2x128xf32>
    %161 = vector.shape_cast %158 : vector<2x2x128xf32> to vector<1x2x2x128xf32>
    tpu.vector_store %arg6[%c0_111, %c6_112, %c0_113, %c0_114], %161 {strides = array<i32>} : memref<1x8x2x128xf32, #tpu.memory_space<vmem>>, vector<1x2x2x128xf32>,
    %cst_115 = arith.constant 0.000000e+00 : f32
    %162 = vector.broadcast %cst_115 : f32 to vector<2x2x128xf32>
    %163 = arith.select %135, %138, %162 : vector<2x2x128xi1>, vector<2x2x128xf32>
    %164 = arith.subf %132, %163 : vector<2x2x128xf32>
    %c0_116 = arith.constant 0 : index
    %c0_117 = arith.constant 0 : index
    %c0_118 = arith.constant 0 : index
    %c0_119 = arith.constant 0 : index
    %165 = vector.load %arg7[%c0_116, %c0_117, %c0_118, %c0_119] : memref<1x2x2x128xf32, #tpu.memory_space<vmem>>, vector<1x2x2x128xf32>
    %166 = vector.shape_cast %165 : vector<1x2x2x128xf32> to vector<2x2x128xf32>
    %167 = arith.addf %166, %164 : vector<2x2x128xf32>
    %c0_120 = arith.constant 0 : index
    %c0_121 = arith.constant 0 : index
    %c0_122 = arith.constant 0 : index
    %c0_123 = arith.constant 0 : index
    %168 = vector.load %arg7[%c0_120, %c0_121, %c0_122, %c0_123] : memref<1x2x2x128xf32, #tpu.memory_space<vmem>>, vector<1x2x2x128xf32>
    %169 = vector.shape_cast %168 : vector<1x2x2x128xf32> to vector<2x2x128xf32>
    %170 = vector.shape_cast %167 : vector<2x2x128xf32> to vector<1x2x2x128xf32>
    tpu.vector_store %arg7[%c0_120, %c0_121, %c0_122, %c0_123], %170 {strides = array<i32>} : memref<1x2x2x128xf32, #tpu.memory_space<vmem>>, vector<1x2x2x128xf32>,
    return
  }
  func.func @transform_0(%arg0: i32, %arg1: i32) -> (i32, i32, i32, i32) {
    %c1_i32 = arith.constant 1 : i32
    %0 = arith.muli %arg0, %c1_i32 : i32
    %1 = arith.addi %0, %arg1 : i32
    %c0_i32 = arith.constant 0 : i32
    %c0_i32_0 = arith.constant 0 : i32
    %c0_i32_1 = arith.constant 0 : i32
    %c0_i32_2 = arith.constant 0 : i32
    return %c0_i32, %c0_i32_0, %1, %c0_i32_1 : i32, i32, i32, i32
  }
  func.func @transform_1(%arg0: i32, %arg1: i32) -> (i32, i32, i32) {
    %c1_i32 = arith.constant 1 : i32
    %0 = arith.muli %arg0, %c1_i32 : i32
    %1 = arith.addi %0, %arg1 : i32
    %c0_i32 = arith.constant 0 : i32
    %c0_i32_0 = arith.constant 0 : i32
    %c0_i32_1 = arith.constant 0 : i32
    return %c0_i32, %1, %c0_i32_0 : i32, i32, i32
  }
  func.func @transform_2(%arg0: i32, %arg1: i32) -> (i32, i32, i32, i32) {
    %c0_i32 = arith.constant 0 : i32
    %c0_i32_0 = arith.constant 0 : i32
    %c0_i32_1 = arith.constant 0 : i32
    %c0_i32_2 = arith.constant 0 : i32
    return %arg0, %c0_i32, %c0_i32_0, %c0_i32_1 : i32, i32, i32, i32
  }
  func.func @transform_3(%arg0: i32, %arg1: i32) -> (i32, i32, i32, i32) {
    %c0_i32 = arith.constant 0 : i32
    %c0_i32_0 = arith.constant 0 : i32
    %c0_i32_1 = arith.constant 0 : i32
    %c0_i32_2 = arith.constant 0 : i32
    return %arg0, %c0_i32, %c0_i32_0, %c0_i32_1 : i32, i32, i32, i32
  }
  func.func @transform_4(%arg0: i32, %arg1: i32) -> (i32, i32, i32, i32) {
    %c0_i32 = arith.constant 0 : i32
    %c0_i32_0 = arith.constant 0 : i32
    %c0_i32_1 = arith.constant 0 : i32
    %c0_i32_2 = arith.constant 0 : i32
    return %arg0, %c0_i32, %c0_i32_0, %c0_i32_1 : i32, i32, i32, i32
  }
  func.func @transform_5(%arg0: i32, %arg1: i32) -> (i32, i32, i32, i32) {
    %c0_i32 = arith.constant 0 : i32
    %c0_i32_0 = arith.constant 0 : i32
    %c0_i32_1 = arith.constant 0 : i32
    %c0_i32_2 = arith.constant 0 : i32
    return %arg0, %c0_i32, %c0_i32_0, %c0_i32_1 : i32, i32, i32, i32
  }
}

</mosaic_0001>

<llo_original>
// kernel: squeeze.1
$region0: #{squeeze.1}
  %s0 = inlined_call_operand.hbm [shape: s32[2,1,16,16], index: 0, kind: input, shape index: {}]
  %s1 = inlined_call_operand.vmem [shape: s32[2,2,128], index: 1, kind: output, shape index: {}]
  $region1: #{squeeze.1} parent=0
    #allocation0 [shape = 'u8[16384]{0}', space=vmem, size = 0x4000, scoped, tag = 'operand span for operand 0']
    #allocation1 [shape = 's32[1]{0}', space=sflag, size = 0x4, scoped, tag = 'scoped memory for squeeze.1']
    #allocation2 [shape = 'u8[8192]{0}', space=vmem, size = 0x2000, scoped, tag = 'scoped mem for output reshape']
    %2 = vsyncpa [#allocation1], 0
    %s4 = ssub.s32 512, 512
    %5 = vsyncadd [#allocation1], %s4
    %s7 = sshll.u32 [#allocation0], 4
    %s8 = int_to_ptr.vmem [resolvable:$true] %s7
    %10 = dma.hbm_to_vmem [thread:$0]  %s0, 512, %s8, [#allocation1]
    %11 = dma.done [#allocation1], 512
    %v12 = vld [vmem:[#allocation0] ss:$8 sm:$0xf]
    %vm13 = vcmask 130048
    %14 = vst.msk [vmem:[#allocation2] sm:$0x3] %vm13, %v12
    %s15 = scalar_lea.vmem [#allocation2], 6
    %16 = vst.msk [vmem:[%s15] sm:$0xc] %vm13, %v12
    %s17 = scalar_lea.vmem [#allocation0], 7
    %v18 = vld [vmem:[%s17] ss:$8 sm:$0xf]
    %19 = vrot.lane.b32.xlu0 %v18, 112
    %v20 = vpop.permute.xlu0 %19
    %vm21 = vcmask 1048448
    %22 = vst.msk [vmem:[#allocation2] sm:$0x3] %vm21, %v20
    %s23 = scalar_lea.vmem [#allocation2], 6
    %24 = vst.msk [vmem:[%s23] sm:$0xc] %vm21, %v20
    %s25 = scalar_lea.vmem [#allocation0], 6
    %v26 = vld [vmem:[%s25] ss:$8 sm:$0xf]
    %27 = vrot.lane.b32.xlu0 %v26, 96
    %v28 = vpop.permute.xlu0 %27
    %vm29 = vcmask 917248
    %30 = vst.msk [vmem:[#allocation2] sm:$0x3] %vm29, %v28
    %s31 = scalar_lea.vmem [#allocation2], 6
    %32 = vst.msk [vmem:[%s31] sm:$0xc] %vm29, %v28
    %s33 = scalar_lea.vmem [#allocation0], 5
    %v34 = vld [vmem:[%s33] ss:$8 sm:$0xf]
    %35 = vrot.lane.b32.xlu0 %v34, 80
    %v36 = vpop.permute.xlu0 %35
    %vm37 = vcmask 786048
    %38 = vst.msk [vmem:[#allocation2] sm:$0x3] %vm37, %v36
    %s39 = scalar_lea.vmem [#allocation2], 6
    %40 = vst.msk [vmem:[%s39] sm:$0xc] %vm37, %v36
    %s41 = scalar_lea.vmem [#allocation0], 4
    %v42 = vld [vmem:[%s41] ss:$8 sm:$0xf]
    %43 = vrot.lane.b32.xlu0 %v42, 64
    %v44 = vpop.permute.xlu0 %43
    %vm45 = vcmask 654848
    %46 = vst.msk [vmem:[#allocation2] sm:$0x3] %vm45, %v44
    %s47 = scalar_lea.vmem [#allocation2], 6
    %48 = vst.msk [vmem:[%s47] sm:$0xc] %vm45, %v44
    %s49 = scalar_lea.vmem [#allocation0], 3
    %v50 = vld [vmem:[%s49] ss:$8 sm:$0xf]
    %51 = vrot.lane.b32.xlu0 %v50, 48
    %v52 = vpop.permute.xlu0 %51
    %vm53 = vcmask 523648
    %54 = vst.msk [vmem:[#allocation2] sm:$0x3] %vm53, %v52
    %s55 = scalar_lea.vmem [#allocation2], 6
    %56 = vst.msk [vmem:[%s55] sm:$0xc] %vm53, %v52
    %s57 = scalar_lea.vmem [#allocation0], 2
    %v58 = vld [vmem:[%s57] ss:$8 sm:$0xf]
    %59 = vrot.lane.b32.xlu0 %v58, 32
    %v60 = vpop.permute.xlu0 %59
    %vm61 = vcmask 392448
    %62 = vst.msk [vmem:[#allocation2] sm:$0x3] %vm61, %v60
    %s63 = scalar_lea.vmem [#allocation2], 6
    %64 = vst.msk [vmem:[%s63] sm:$0xc] %vm61, %v60
    %s65 = scalar_lea.vmem [#allocation0], 1
    %v66 = vld [vmem:[%s65] ss:$8 sm:$0xf]
    %67 = vrot.lane.b32.xlu0 %v66, 16
    %v68 = vpop.permute.xlu0 %67
    %vm69 = vcmask 261248
    %70 = vst.msk [vmem:[#allocation2] sm:$0x3] %vm69, %v68
    %s71 = scalar_lea.vmem [#allocation2], 6
    %72 = vst.msk [vmem:[%s71] sm:$0xc] %vm69, %v68
    %s74 = sshllo.u32 0, 2
    %v76 = vld [vmem:[#allocation2] sm:%s74]
    %s77 = sshllo.u32 0, 2
    %78 = vst [vmem:[%s1] sm:%s77] %v76
    %s79 = scalar_lea.vmem [#allocation2], 8
    %v80 = vld [vmem:[%s79] sm:%s74]
    %s81 = sshllo.u32 0, 2
    %s82 = scalar_lea.vmem %s1, 2
    %83 = vst [vmem:[%s82] sm:%s81] %v80
    %84 = vsyncpa [#allocation1], 1

// kernel: dc_and_ce_sc_loss.1
$region0: #{dc_and_ce_sc_loss.1}
  #allocation0 [shape = 'u32[]', space=smem, size = 0x4, offset = 0x4, fixed_abs, tag = 'smem constant byte address 0x4 - core index']
  #allocation1 [shape = 'u32[144,128]{1,0:T(1,128)}', space=vmem, size = 0x12000, scoped, tag = 'internal scratch']
  %s0 = inlined_call_operand.vmem [shape: f32[2,4,2,128], index: 0, kind: input, shape index: {}]
  %s1 = inlined_call_operand.vmem [shape: s32[2,2,128], index: 1, kind: input, shape index: {}]
  %s2 = inlined_call_operand.vmem [shape: f32[1,8,2,128], index: 2, kind: output, shape index: {0}]
  %s3 = inlined_call_operand.vmem [shape: f32[1,8,2,128], index: 3, kind: output, shape index: {1}]
  %s4 = inlined_call_operand.vmem [shape: f32[1,8,2,128], index: 4, kind: output, shape index: {2}]
  %s5 = inlined_call_operand.vmem [shape: f32[1,2,2,128], index: 5, kind: output, shape index: {3}]
  %6 = xla_tuple %s2, %s3, %s4, %s5
  %s7 = sld [smem:[#allocation0]]
  $region46: #{dc_and_ce_sc_loss.1} parent=0
    _
  %s9 = ssub.s32 1, %s7
  %s10 = scalar_select 0, %s9, %s7
  // Predicated region
  $region2: #{dc_and_ce_sc_loss.1} parent=0 // pred_check
    _
  $region3: #{dc_and_ce_sc_loss.1} parent=0 // pred_check_branch
    %12 = sbr.rel (0) target = $region5
  $region4: #{dc_and_ce_sc_loss.1} parent=0 // pred_region
    %s13 = sadd.s32 0, 0
    %p14 = scmp.lt.s32.totalorder %s13, 0
    %s15 = scalar_select %p14, %s13, 0
    %s16 = smul.addr %s15, 2
    %s17 = scalar_lea.vmem %s0, %s16
    %s18 = sadd.s32 0, 0
  $region5: #{dc_and_ce_sc_loss.1} parent=0 // pred_fallthru
    _
  // Predicated region
  $region6: #{dc_and_ce_sc_loss.1} parent=0 // pred_check
    _
  $region7: #{dc_and_ce_sc_loss.1} parent=0 // pred_check_branch
    %20 = sbr.rel (0) target = $region9
  $region8: #{dc_and_ce_sc_loss.1} parent=0 // pred_region
    %s21 = sadd.s32 0, 0
    %p22 = scmp.lt.s32.totalorder %s21, 0
    %s23 = scalar_select %p22, %s21, 0
    %s24 = smul.addr %s23, 2
    %s25 = scalar_lea.vmem %s1, %s24
    %s26 = sadd.s32 0, 0
  $region9: #{dc_and_ce_sc_loss.1} parent=0 // pred_fallthru
    _
  %s27 = sadd.s32 0, 0
  %p28 = scmp.lt.s32.totalorder %s27, 0
  %s29 = scalar_select %p28, %s27, 0
  %s30 = smul.addr %s29, 2
  %s31 = scalar_lea.vmem %s0, %s30
  %s32 = sadd.s32 0, 0
  %p33 = scmp.lt.s32.totalorder %s32, 0
  %s34 = scalar_select %p33, %s32, 0
  %s35 = smul.addr %s34, 2
  %s36 = scalar_lea.vmem %s1, %s35
  %s37 = sadd.s32 0, 0
  %p38 = scmp.lt.s32.totalorder %s37, 0
  %s39 = scalar_select %p38, %s37, 0
  %s40 = smul.addr %s39, 2
  %s41 = scalar_lea.vmem %s0, %s40
  %s42 = sadd.s32 0, 0
  %s43 = sadd.s32 0, 0
  %p44 = scmp.lt.s32.totalorder %s43, 0
  %s45 = scalar_select %p44, %s43, 0
  %s46 = smul.addr %s45, 2
  %s47 = scalar_lea.vmem %s1, %s46
  %s48 = sadd.s32 0, 0
  %p49 = scmp.eq.s32.totalorder 0, 0
  // Predicated region
  $region10: #{dc_and_ce_sc_loss.1} parent=0 // pred_check
    %p50 = pneg %p49
  $region11: #{dc_and_ce_sc_loss.1} parent=0 // pred_check_branch
    %52 = sbr.rel (%p50) target = $region13
  $region12: #{dc_and_ce_sc_loss.1} parent=0 // pred_region
    %53 = vst [vmem:[%s2] sm:$0x3] 0.0
    %54 = vst [vmem:[%s2 + $0x2] sm:$0x3] 0.0
    %55 = vst [vmem:[%s2 + $0x4] sm:$0x3] 0.0
    %56 = vst [vmem:[%s2 + $0x6] sm:$0x3] 0.0
    %57 = vst [vmem:[%s2 + $0x8] sm:$0x3] 0.0
    %58 = vst [vmem:[%s2 + $0xa] sm:$0x3] 0.0
    %59 = vst [vmem:[%s2 + $0xc] sm:$0x3] 0.0
    %60 = vst [vmem:[%s2 + $0xe] sm:$0x3] 0.0
    %61 = vst [vmem:[%s3] sm:$0x3] 0.0
    %62 = vst [vmem:[%s3 + $0x2] sm:$0x3] 0.0
    %63 = vst [vmem:[%s3 + $0x4] sm:$0x3] 0.0
    %64 = vst [vmem:[%s3 + $0x6] sm:$0x3] 0.0
    %65 = vst [vmem:[%s3 + $0x8] sm:$0x3] 0.0
    %66 = vst [vmem:[%s3 + $0xa] sm:$0x3] 0.0
    %67 = vst [vmem:[%s3 + $0xc] sm:$0x3] 0.0
    %68 = vst [vmem:[%s3 + $0xe] sm:$0x3] 0.0
    %69 = vst [vmem:[%s4] sm:$0x3] 0.0
    %70 = vst [vmem:[%s4 + $0x2] sm:$0x3] 0.0
    %71 = vst [vmem:[%s4 + $0x4] sm:$0x3] 0.0
    %72 = vst [vmem:[%s4 + $0x6] sm:$0x3] 0.0
    %73 = vst [vmem:[%s4 + $0x8] sm:$0x3] 0.0
    %74 = vst [vmem:[%s4 + $0xa] sm:$0x3] 0.0
    %75 = vst [vmem:[%s4 + $0xc] sm:$0x3] 0.0
    %76 = vst [vmem:[%s4 + $0xe] sm:$0x3] 0.0
    %77 = vst [vmem:[%s5] sm:$0x3] 0.0
    %78 = vst [vmem:[%s5 + $0x2] sm:$0x3] 0.0
  $region13: #{dc_and_ce_sc_loss.1} parent=0 // pred_fallthru
    _
  %v79 = vld [vmem:[%s41] sm:$0x3]
  %v80 = vld [vmem:[%s41 + $0x2] sm:$0x3]
  %v81 = vld [vmem:[%s41 + $0x4] sm:$0x3]
  %v82 = vld [vmem:[%s41 + $0x6] sm:$0x3]
  %v83 = vld [vmem:[%s41 + $0x8] sm:$0x3]
  %v84 = vld [vmem:[%s41 + $0xa] sm:$0x3]
  %v85 = vld [vmem:[%s41 + $0xc] sm:$0x3]
  %v86 = vld [vmem:[%s41 + $0xe] sm:$0x3]
  %v87 = vld [vmem:[%s47] sm:$0x3]
  %v88 = vld [vmem:[%s47 + $0x2] sm:$0x3]
  %v89 = vmax.f32 %v79, %v80
  %v90 = vmax.f32 %v83, %v84
  %v91 = vmax.f32 %v89, %v81
  %v92 = vmax.f32 %v90, %v85
  %v93 = vmax.f32 %v91, %v82
  %v94 = vmax.f32 %v92, %v86
  %v95 = vsub.f32 %v79, %v93
  %v96 = vsub.f32 %v83, %v94
  %v97 = vmul.f32 %v95, 1.442695
  %v98 = vpow.pop %v97
  %v99 = vmul.f32 %v96, 1.442695
  %v100 = vpow.pop %v99
  %v101 = vsub.f32 %v80, %v93
  %v102 = vsub.f32 %v84, %v94
  %v103 = vmul.f32 %v101, 1.442695
  %v104 = vpow.pop %v103
  %v105 = vmul.f32 %v102, 1.442695
  %v106 = vpow.pop %v105
  %v107 = vadd.f32 %v98, %v104
  %v108 = vadd.f32 %v100, %v106
  %v109 = vsub.f32 %v81, %v93
  %v110 = vsub.f32 %v85, %v94
  %v111 = vmul.f32 %v109, 1.442695
  %v112 = vpow.pop %v111
  %v113 = vmul.f32 %v110, 1.442695
  %v114 = vpow.pop %v113
  %v115 = vadd.f32 %v107, %v112
  %v116 = vadd.f32 %v108, %v114
  %v117 = vsub.f32 %v82, %v93
  %v118 = vsub.f32 %v86, %v94
  %v119 = vmul.f32 %v117, 1.442695
  %v120 = vpow.pop %v119
  %v121 = vmul.f32 %v118, 1.442695
  %v122 = vpow.pop %v121
  %v123 = vadd.f32 %v115, %v120
  %v124 = vadd.f32 %v116, %v122
  %v125 = vrcp.pop %v123
  %v126 = vrcp.pop %v124
  %v127 = vlog2.pop %v123
  %v128 = vmul.f32 %v127, 0.6931472
  %v129 = vlog2.pop %v124
  %v130 = vmul.f32 %v129, 0.6931472
  %v131 = vmul.f32 %v98, %v125
  %v132 = vmul.f32 %v100, %v126
  %vm133 = vcmp.eq.s32.totalorder %v87, 0
  %vm134 = vcmp.eq.s32.totalorder %v88, 0
  %v135 = vld [vmem:[%s2] sm:$0x3]
  %v136 = vld [vmem:[%s2 + $0x2] sm:$0x3]
  %v137 = vsel %vm133, %v131, 0.0
  %v138 = vsel %vm134, %v132, 0.0
  %v139 = vadd.f32 %v135, %v137
  %v140 = vadd.f32 %v136, %v138
  %141 = vst [vmem:[%s2] sm:$0x3] %v139
  %142 = vst [vmem:[%s2 + $0x2] sm:$0x3] %v140
  %v143 = vld [vmem:[%s3] sm:$0x3]
  %v144 = vld [vmem:[%s3 + $0x2] sm:$0x3]
  %v145 = vadd.f32 %v143, %v131
  %v146 = vadd.f32 %v144, %v132
  %147 = vst [vmem:[%s3] sm:$0x3] %v145
  %148 = vst [vmem:[%s3 + $0x2] sm:$0x3] %v146
  %v149 = vld [vmem:[%s4] sm:$0x3]
  %v150 = vld [vmem:[%s4 + $0x2] sm:$0x3]
  %v151 = vsel %vm133, 1.0, 0.0
  %v152 = vsel %vm134, 1.0, 0.0
  %v153 = vadd.f32 %v149, %v151
  %v154 = vadd.f32 %v150, %v152
  %155 = vst [vmem:[%s4] sm:$0x3] %v153
  %156 = vst [vmem:[%s4 + $0x2] sm:$0x3] %v154
  %v157 = vsel %vm133, %v95, 0.0
  %v158 = vsel %vm134, %v96, 0.0
  %v159 = vsub.f32 %v128, %v157
  %v160 = vsub.f32 %v130, %v158
  %v161 = vmul.f32 %v104, %v125
  %v162 = vmul.f32 %v106, %v126
  %vm163 = vcmp.eq.s32.totalorder %v87, 1
  %vm164 = vcmp.eq.s32.totalorder %v88, 1
  %s165 = scalar_lea.vmem %s2, 4
  %v166 = vld [vmem:[%s165] sm:$0x3]
  %v167 = vld [vmem:[%s165 + $0x2] sm:$0x3]
  %v168 = vsel %vm163, %v161, 0.0
  %v169 = vsel %vm164, %v162, 0.0
  %v170 = vadd.f32 %v166, %v168
  %v171 = vadd.f32 %v167, %v169
  %172 = vst [vmem:[%s165] sm:$0x3] %v170
  %173 = vst [vmem:[%s165 + $0x2] sm:$0x3] %v171
  %s174 = scalar_lea.vmem %s3, 4
  %v175 = vld [vmem:[%s174] sm:$0x3]
  %v176 = vld [vmem:[%s174 + $0x2] sm:$0x3]
  %v177 = vadd.f32 %v175, %v161
  %v178 = vadd.f32 %v176, %v162
  %179 = vst [vmem:[%s174] sm:$0x3] %v177
  %180 = vst [vmem:[%s174 + $0x2] sm:$0x3] %v178
  %s181 = scalar_lea.vmem %s4, 4
  %v182 = vld [vmem:[%s181] sm:$0x3]
  %v183 = vld [vmem:[%s181 + $0x2] sm:$0x3]
  %v184 = vsel %vm163, 1.0, 0.0
  %v185 = vsel %vm164, 1.0, 0.0
  %v186 = vadd.f32 %v182, %v184
  %v187 = vadd.f32 %v183, %v185
  %188 = vst [vmem:[%s181] sm:$0x3] %v186
  %189 = vst [vmem:[%s181 + $0x2] sm:$0x3] %v187
  %v190 = vsel %vm163, %v101, 0.0
  %v191 = vsel %vm164, %v102, 0.0
  %v192 = vsub.f32 %v159, %v190
  %v193 = vsub.f32 %v160, %v191
  %v194 = vmul.f32 %v112, %v125
  %v195 = vmul.f32 %v114, %v126
  %vm196 = vcmp.eq.s32.totalorder %v87, 2
  %vm197 = vcmp.eq.s32.totalorder %v88, 2
  %s198 = scalar_lea.vmem %s2, 8
  %v199 = vld [vmem:[%s198] sm:$0x3]
  %v200 = vld [vmem:[%s198 + $0x2] sm:$0x3]
  %v201 = vsel %vm196, %v194, 0.0
  %v202 = vsel %vm197, %v195, 0.0
  %v203 = vadd.f32 %v199, %v201
  %v204 = vadd.f32 %v200, %v202
  %205 = vst [vmem:[%s198] sm:$0x3] %v203
  %206 = vst [vmem:[%s198 + $0x2] sm:$0x3] %v204
  %s207 = scalar_lea.vmem %s3, 8
  %v208 = vld [vmem:[%s207] sm:$0x3]
  %v209 = vld [vmem:[%s207 + $0x2] sm:$0x3]
  %v210 = vadd.f32 %v208, %v194
  %v211 = vadd.f32 %v209, %v195
  %212 = vst [vmem:[%s207] sm:$0x3] %v210
  %213 = vst [vmem:[%s207 + $0x2] sm:$0x3] %v211
  %s214 = scalar_lea.vmem %s4, 8
  %v215 = vld [vmem:[%s214] sm:$0x3]
  %v216 = vld [vmem:[%s214 + $0x2] sm:$0x3]
  %v217 = vsel %vm196, 1.0, 0.0
  %v218 = vsel %vm197, 1.0, 0.0
  %v219 = vadd.f32 %v215, %v217
  %v220 = vadd.f32 %v216, %v218
  %221 = vst [vmem:[%s214] sm:$0x3] %v219
  %222 = vst [vmem:[%s214 + $0x2] sm:$0x3] %v220
  %v223 = vsel %vm196, %v109, 0.0
  %v224 = vsel %vm197, %v110, 0.0
  %v225 = vsub.f32 %v192, %v223
  %v226 = vsub.f32 %v193, %v224
  %v227 = vmul.f32 %v120, %v125
  %v228 = vmul.f32 %v122, %v126
  %vm229 = vcmp.eq.s32.totalorder %v87, 3
  %vm230 = vcmp.eq.s32.totalorder %v88, 3
  %s231 = scalar_lea.vmem %s2, 12
  %v232 = vld [vmem:[%s231] sm:$0x3]
  %v233 = vld [vmem:[%s231 + $0x2] sm:$0x3]
  %v234 = vsel %vm229, %v227, 0.0
  %v235 = vsel %vm230, %v228, 0.0
  %v236 = vadd.f32 %v232, %v234
  %v237 = vadd.f32 %v233, %v235
  %238 = vst [vmem:[%s231] sm:$0x3] %v236
  %239 = vst [vmem:[%s231 + $0x2] sm:$0x3] %v237
  %s240 = scalar_lea.vmem %s3, 12
  %v241 = vld [vmem:[%s240] sm:$0x3]
  %v242 = vld [vmem:[%s240 + $0x2] sm:$0x3]
  %v243 = vadd.f32 %v241, %v227
  %v244 = vadd.f32 %v242, %v228
  %245 = vst [vmem:[%s240] sm:$0x3] %v243
  %246 = vst [vmem:[%s240 + $0x2] sm:$0x3] %v244
  %s247 = scalar_lea.vmem %s4, 12
  %v248 = vld [vmem:[%s247] sm:$0x3]
  %v249 = vld [vmem:[%s247 + $0x2] sm:$0x3]
  %v250 = vsel %vm229, 1.0, 0.0
  %v251 = vsel %vm230, 1.0, 0.0
  %v252 = vadd.f32 %v248, %v250
  %v253 = vadd.f32 %v249, %v251
  %254 = vst [vmem:[%s247] sm:$0x3] %v252
  %255 = vst [vmem:[%s247 + $0x2] sm:$0x3] %v253
  %v256 = vsel %vm229, %v117, 0.0
  %v257 = vsel %vm230, %v118, 0.0
  %v258 = vsub.f32 %v225, %v256
  %v259 = vsub.f32 %v226, %v257
  %v260 = vld [vmem:[%s5] sm:$0x3]
  %v261 = vld [vmem:[%s5 + $0x2] sm:$0x3]
  %v262 = vadd.f32 %v260, %v258
  %v263 = vadd.f32 %v261, %v259
  %264 = vst [vmem:[%s5] sm:$0x3] %v262
  %265 = vst [vmem:[%s5 + $0x2] sm:$0x3] %v263
  // Predicated region
  $region14: #{dc_and_ce_sc_loss.1} parent=0 // pred_check
    _
  $region15: #{dc_and_ce_sc_loss.1} parent=0 // pred_check_branch
    %267 = sbr.rel (0) target = $region17
  $region16: #{dc_and_ce_sc_loss.1} parent=0 // pred_region
    _
  $region17: #{dc_and_ce_sc_loss.1} parent=0 // pred_fallthru
    _
  // Predicated region
  $region18: #{dc_and_ce_sc_loss.1} parent=0 // pred_check
    _
  $region19: #{dc_and_ce_sc_loss.1} parent=0 // pred_check_branch
    %269 = sbr.rel (0) target = $region21
  $region20: #{dc_and_ce_sc_loss.1} parent=0 // pred_region
    _
  $region21: #{dc_and_ce_sc_loss.1} parent=0 // pred_fallthru
    _
  // Predicated region
  $region22: #{dc_and_ce_sc_loss.1} parent=0 // pred_check
    _
  $region23: #{dc_and_ce_sc_loss.1} parent=0 // pred_check_branch
    %271 = sbr.rel (0) target = $region25
  $region24: #{dc_and_ce_sc_loss.1} parent=0 // pred_region
    _
  $region25: #{dc_and_ce_sc_loss.1} parent=0 // pred_fallthru
    _
  // Predicated region
  $region26: #{dc_and_ce_sc_loss.1} parent=0 // pred_check
    _
  $region27: #{dc_and_ce_sc_loss.1} parent=0 // pred_check_branch
    %273 = sbr.rel (0) target = $region29
  $region28: #{dc_and_ce_sc_loss.1} parent=0 // pred_region
    _
  $region29: #{dc_and_ce_sc_loss.1} parent=0 // pred_fallthru
    _
  // Predicated region
  $region30: #{dc_and_ce_sc_loss.1} parent=0 // pred_check
    _
  $region31: #{dc_and_ce_sc_loss.1} parent=0 // pred_check_branch
    %275 = sbr.rel (0) target = $region33
  $region32: #{dc_and_ce_sc_loss.1} parent=0 // pred_region
    _
  $region33: #{dc_and_ce_sc_loss.1} parent=0 // pred_fallthru
    _
  // Predicated region
  $region34: #{dc_and_ce_sc_loss.1} parent=0 // pred_check
    _
  $region35: #{dc_and_ce_sc_loss.1} parent=0 // pred_check_branch
    %277 = sbr.rel (0) target = $region37
  $region36: #{dc_and_ce_sc_loss.1} parent=0 // pred_region
    _
  $region37: #{dc_and_ce_sc_loss.1} parent=0 // pred_fallthru
    _
  // Predicated region
  $region38: #{dc_and_ce_sc_loss.1} parent=0 // pred_check
    _
  $region39: #{dc_and_ce_sc_loss.1} parent=0 // pred_check_branch
    %279 = sbr.rel (0) target = $region41
  $region40: #{dc_and_ce_sc_loss.1} parent=0 // pred_region
    _
  $region41: #{dc_and_ce_sc_loss.1} parent=0 // pred_fallthru
    _
  // Predicated region
  $region42: #{dc_and_ce_sc_loss.1} parent=0 // pred_check
    _
  $region43: #{dc_and_ce_sc_loss.1} parent=0 // pred_check_branch
    %281 = sbr.rel (0) target = $region45
  $region44: #{dc_and_ce_sc_loss.1} parent=0 // pred_region
    _
  $region45: #{dc_and_ce_sc_loss.1} parent=0 // pred_fallthru
    _

</llo_original>
